<compile_context>
chip_gen: v5e
topology: v5e:2x2
jax: 0.10.0
libtpu: 0.0.40
codegen_flags: <defaults>
</compile_context>

<pallas_src>
import functools
import math

import jax
import jax.numpy as jnp
from jax.experimental import pallas as pl
from jax.experimental.pallas import tpu as pltpu

LANE = 128


def _round_up(v, m):
    return ((v + m - 1) // m) * m


def _pick_tile(n, target, align):
    """Largest multiple of `align` that divides n and is <= target; else full n."""
    if n % align == 0:
        t = min(target, n)
        t -= t % align
        while t >= align:
            if n % t == 0:
                return t
            t -= align
    return n  # full extent is always a legal block shape


# ----------------------------- layer 1 kernel -------------------------------
def gc1_kernel(adj_ref, x_ref, w1_ref, b1_ref, h_ref, acc_ref):
    # grid = (row blocks i, contraction blocks k); k is the last ("arbitrary") axis.
    k = pl.program_id(1)

    @pl.when(k == 0)
    def _():
        acc_ref[...] = jnp.zeros_like(acc_ref)

    # support block: x[k_block] @ W1   (bf16 x bf16 -> f32 acc)
    s = jnp.dot(x_ref[...], w1_ref[...], preferred_element_type=jnp.float32)
    # accumulate adj[i_block, k_block] @ support
    acc_ref[...] += jnp.dot(
        adj_ref[...], s.astype(adj_ref.dtype), preferred_element_type=jnp.float32
    )

    @pl.when(k == pl.num_programs(1) - 1)
    def _():
        # bias + relu only in the finalize (not per reduction step)
        h = jnp.maximum(acc_ref[...] + b1_ref[...], 0.0)
        # F.dropout(h, p, training): inference mode -> identity.
        # TODO(synk): training-mode dropout (pltpu.prng_random_bits mask) not emitted.
        h_ref[...] = h.astype(h_ref.dtype)


# ------------------------ layer 2 + log_softmax kernel -----------------------
def gc2_kernel(adj_ref, h_ref, w2_ref, b2_ref, out_ref, acc_ref, *, nclass):
    k = pl.program_id(1)

    @pl.when(k == 0)
    def _():
        acc_ref[...] = jnp.zeros_like(acc_ref)

    s = jnp.dot(h_ref[...], w2_ref[...], preferred_element_type=jnp.float32)
    acc_ref[...] += jnp.dot(
        adj_ref[...], s.astype(adj_ref.dtype), preferred_element_type=jnp.float32
    )

    @pl.when(k == pl.num_programs(1) - 1)
    def _():
        logits = acc_ref[...] + b2_ref[...]
        # Mask padded class lanes so the row-wise log_softmax ignores them.
        col = jax.lax.broadcasted_iota(jnp.int32, logits.shape, 1)
        logits = jnp.where(col < nclass, logits, jnp.float32(-1e30))
        m = jnp.max(logits, axis=1, keepdims=True)
        z = logits - m
        lse = jnp.log(jnp.sum(jnp.exp(z), axis=1, keepdims=True))
        out_ref[...] = (z - lse).astype(out_ref.dtype)


# --------------------------------- wrapper ----------------------------------
def gcn_forward(x, adj, w1, b1, w2, b2):
    N, nfeat = x.shape
    nhid = w1.shape[1]
    nclass = w2.shape[1]

    HID_PAD = _round_up(nhid, LANE)
    CLS_PAD = _round_up(nclass, LANE)

    # Row tile (sublane axis of adj): multiple of 8; contraction tile (lane axis
    # of adj): multiple of 128; both fall back to the full dim for tiny N.
    TM = _pick_tile(N, 256, 8)
    TK = _pick_tile(N, 512, 128)
    grid = (N // TM, N // TK)

    f32 = jnp.float32
    bf16 = jnp.bfloat16

    # bf16 matmul inputs (halves adj HBM traffic / VMEM footprint); zero-pad
    # hidden / class widths to 128 lanes so stores are unmasked and lane-dense.
    adj_b = adj.astype(bf16)
    x_b = x.astype(bf16)
    w1_p = jnp.zeros((nfeat, HID_PAD), bf16).at[:, :nhid].set(w1.astype(bf16))
    b1_p = jnp.zeros((1, HID_PAD), f32).at[:, :nhid].set(b1.reshape(1, nhid).astype(f32))
    w2_p = jnp.zeros((HID_PAD, CLS_PAD), bf16).at[:nhid, :nclass].set(w2.astype(bf16))
    b2_p = jnp.zeros((1, CLS_PAD), f32).at[:, :nclass].set(b2.reshape(1, nclass).astype(f32))

    compiler_params = pltpu.CompilerParams(
        dimension_semantics=("parallel", "arbitrary"),
        vmem_limit_bytes=48 * 1024 * 1024,  # sized for v7x's 64 MiB VMEM, fits v5e/v6e
    )

    # ------------------------------ layer 1 ---------------------------------
    cost1 = pl.CostEstimate(
        flops=2 * N * N * HID_PAD + 2 * N * nfeat * HID_PAD * (N // TM),
        transcendentals=0,
        bytes_accessed=2 * N * N + 2 * N * nfeat + 2 * nfeat * HID_PAD
        + 4 * HID_PAD + 2 * N * HID_PAD,
    )
    h = pl.pallas_call(
        gc1_kernel,
        out_shape=jax.ShapeDtypeStruct((N, HID_PAD), bf16),
        grid_spec=pltpu.PrefetchScalarGridSpec(
            num_scalar_prefetch=0,
            grid=grid,
            in_specs=[
                pl.BlockSpec((TM, TK), lambda i, k: (i, k)),          # adj tile
                pl.BlockSpec((TK, nfeat), lambda i, k: (k, 0)),       # x rows of block k
                pl.BlockSpec((nfeat, HID_PAD), lambda i, k: (0, 0)),  # W1 (resident)
                pl.BlockSpec((1, HID_PAD), lambda i, k: (0, 0)),      # b1 (resident)
            ],
            out_specs=pl.BlockSpec((TM, HID_PAD), lambda i, k: (i, 0)),
            scratch_shapes=[pltpu.VMEM((TM, HID_PAD), f32)],
        ),
        compiler_params=compiler_params,
        cost_estimate=cost1,
    )(adj_b, x_b, w1_p, b1_p)

    # ------------------------ layer 2 + log_softmax -------------------------
    cost2 = pl.CostEstimate(
        flops=2 * N * N * CLS_PAD + 2 * N * HID_PAD * CLS_PAD * (N // TM),
        transcendentals=N * CLS_PAD,
        bytes_accessed=2 * N * N + 2 * N * HID_PAD + 2 * HID_PAD * CLS_PAD
        + 4 * CLS_PAD + 4 * N * CLS_PAD,
    )
    out_p = pl.pallas_call(
        functools.partial(gc2_kernel, nclass=nclass),
        out_shape=jax.ShapeDtypeStruct((N, CLS_PAD), f32),
        grid_spec=pltpu.PrefetchScalarGridSpec(
            num_scalar_prefetch=0,
            grid=grid,
            in_specs=[
                pl.BlockSpec((TM, TK), lambda i, k: (i, k)),            # adj tile
                pl.BlockSpec((TK, HID_PAD), lambda i, k: (k, 0)),       # h rows of block k
                pl.BlockSpec((HID_PAD, CLS_PAD), lambda i, k: (0, 0)),  # W2 (resident)
                pl.BlockSpec((1, CLS_PAD), lambda i, k: (0, 0)),        # b2 (resident)
            ],
            out_specs=pl.BlockSpec((TM, CLS_PAD), lambda i, k: (i, 0)),
            scratch_shapes=[pltpu.VMEM((TM, CLS_PAD), f32)],
        ),
        compiler_params=compiler_params,
        cost_estimate=cost2,
    )(adj_b, h, w2_p, b2_p)

    # Drop the padded class lanes (store inside the kernel stays lane-dense).
    return out_p[:, :nclass]


def init_gc_params(key, in_features, out_features):
    # Mirrors GraphConvolution.reset_parameters: uniform(-stdv, stdv), stdv = 1/sqrt(out_features)
    stdv = 1.0 / math.sqrt(out_features)
    kw, kb = jax.random.split(key)
    w = jax.random.uniform(kw, (in_features, out_features), jnp.float32, -stdv, stdv)
    b = jax.random.uniform(kb, (1, out_features), jnp.float32, -stdv, stdv)
    return w, b


if __name__ == "__main__":
    # Small, deterministic problem: N nodes, nfeat -> nhid -> nclass
    N, nfeat, nhid, nclass = 16, 32, 16, 8

    key = jax.random.PRNGKey(0)
    kx, kadj, k1, k2 = jax.random.split(key, 4)

    x = jax.random.normal(kx, (N, nfeat), jnp.float32)

    # Deterministic normalized adjacency: (A + I), row-normalized (dense spmm).
    a_raw = (jax.random.uniform(kadj, (N, N)) > 0.7).astype(jnp.float32)
    a = jnp.maximum(a_raw, a_raw.T) + jnp.eye(N, dtype=jnp.float32)
    adj = a / jnp.sum(a, axis=1, keepdims=True)

    w1, b1 = init_gc_params(k1, nfeat, nhid)
    w2, b2 = init_gc_params(k2, nhid, nclass)

    out = gcn_forward(x, adj, w1, b1, w2, b2)
    jax.block_until_ready(out)
    assert out.shape == (N, nclass)

    # Reference in plain f32 JAX (kernel uses bf16 matmul inputs -> loosen tol).
    h_ref = jnp.maximum(adj @ (x @ w1) + b1, 0.0)
    logits_ref = adj @ (h_ref @ w2) + b2
    ref = jax.nn.log_softmax(logits_ref, axis=1)
    max_err = jnp.max(jnp.abs(out - ref))
    assert jnp.allclose(out, ref, atol=5e-2, rtol=5e-2), f"max abs err = {max_err}"

    print("KERNEL_OK")
</pallas_src>

<mosaic_0001>
module attributes {stable_mosaic.version = 11 : i64} {
  func.func @gc1_kernel(%arg0: i32, %arg1: i32, %arg2: memref<16x16xbf16, #tpu.memory_space<vmem>>, %arg3: memref<16x32xbf16, #tpu.memory_space<vmem>>, %arg4: memref<32x128xbf16, #tpu.memory_space<vmem>>, %arg5: memref<1x128xf32, #tpu.memory_space<vmem>>, %arg6: memref<16x128xbf16, #tpu.memory_space<vmem>>, %arg7: memref<16x128xf32, #tpu.memory_space<vmem>>) attributes {dimension_semantics = [#tpu.dimension_semantics<parallel>, #tpu.dimension_semantics<arbitrary>], iteration_bounds = array<i64: 1, 1>, scalar_prefetch = 0 : i64, scratch_operands = 1 : i64, tpu.core_type = #tpu.core_type<tc>, window_params = [{transform_indices = @transform_0, window_bounds = array<i64: 16, 16>}, {transform_indices = @transform_1, window_bounds = array<i64: 16, 32>}, {pipeline_mode = #tpu.pipeline_mode<synchronous>, transform_indices = @transform_2, window_bounds = array<i64: 32, 128>}, {pipeline_mode = #tpu.pipeline_mode<synchronous>, transform_indices = @transform_3, window_bounds = array<i64: 1, 128>}, {transform_indices = @transform_4, window_bounds = array<i64: 16, 128>}]} {
    %c0_i32 = arith.constant 0 : i32
    %0 = arith.cmpi eq, %arg1, %c0_i32 : i32
    %1 = arith.extui %0 : i1 to i32
    %c0_i32_0 = arith.constant 0 : i32
    %2 = arith.cmpi ne, %1, %c0_i32_0 : i32
    scf.if %2 {
      %cst_13 = arith.constant 0.000000e+00 : f32
      %15 = vector.broadcast %cst_13 : f32 to vector<16x128xf32>
      %c0_14 = arith.constant 0 : index
      %c0_15 = arith.constant 0 : index
      %16 = vector.load %arg7[%c0_14, %c0_15] : memref<16x128xf32, #tpu.memory_space<vmem>>, vector<16x128xf32>
      tpu.vector_store %arg7[%c0_14, %c0_15], %15 {strides = array<i32>} : memref<16x128xf32, #tpu.memory_space<vmem>>, vector<16x128xf32>,
    } else {
    }
    %c0 = arith.constant 0 : index
    %c0_1 = arith.constant 0 : index
    %3 = vector.load %arg3[%c0, %c0_1] : memref<16x32xbf16, #tpu.memory_space<vmem>>, vector<16x32xbf16>
    %c0_2 = arith.constant 0 : index
    %c0_3 = arith.constant 0 : index
    %4 = vector.load %arg4[%c0_2, %c0_3] : memref<32x128xbf16, #tpu.memory_space<vmem>>, vector<32x128xbf16>
    %cst = arith.constant dense<0.000000e+00> : vector<16x128xf32>
    %5 = tpu.matmul %3, %4, %cst {dimension_numbers = #tpu.dot_dimension_numbers<[1], [0], [0], [1], [0, 0, 1, 1], [], []>} : vector<16x32xbf16>, vector<32x128xbf16>, vector<16x128xf32> -> vector<16x128xf32>
    %c0_4 = arith.constant 0 : index
    %c0_5 = arith.constant 0 : index
    %6 = vector.load %arg7[%c0_4, %c0_5] : memref<16x128xf32, #tpu.memory_space<vmem>>, vector<16x128xf32>
    %c0_6 = arith.constant 0 : index
    %c0_7 = arith.constant 0 : index
    %7 = vector.load %arg2[%c0_6, %c0_7] : memref<16x16xbf16, #tpu.memory_space<vmem>>, vector<16x16xbf16>
    %8 = arith.truncf %5 : vector<16x128xf32> to vector<16x128xbf16>
    %cst_8 = arith.constant dense<0.000000e+00> : vector<16x128xf32>
    %9 = tpu.matmul %7, %8, %cst_8 {dimension_numbers = #tpu.dot_dimension_numbers<[1], [0], [0], [1], [0, 0, 1, 1], [], []>} : vector<16x16xbf16>, vector<16x128xbf16>, vector<16x128xf32> -> vector<16x128xf32>
    %10 = arith.addf %6, %9 : vector<16x128xf32>
    %c0_9 = arith.constant 0 : index
    %c0_10 = arith.constant 0 : index
    %11 = vector.load %arg7[%c0_9, %c0_10] : memref<16x128xf32, #tpu.memory_space<vmem>>, vector<16x128xf32>
    tpu.vector_store %arg7[%c0_9, %c0_10], %10 {strides = array<i32>} : memref<16x128xf32, #tpu.memory_space<vmem>>, vector<16x128xf32>,
    %c0_i32_11 = arith.constant 0 : i32
    %12 = arith.cmpi eq, %arg1, %c0_i32_11 : i32
    %13 = arith.extui %12 : i1 to i32
    %c0_i32_12 = arith.constant 0 : i32
    %14 = arith.cmpi ne, %13, %c0_i32_12 : i32
    scf.if %14 {
      %c0_13 = arith.constant 0 : index
      %c0_14 = arith.constant 0 : index
      %15 = vector.load %arg7[%c0_13, %c0_14] : memref<16x128xf32, #tpu.memory_space<vmem>>, vector<16x128xf32>
      %c0_15 = arith.constant 0 : index
      %c0_16 = arith.constant 0 : index
      %16 = vector.load %arg5[%c0_15, %c0_16] : memref<1x128xf32, #tpu.memory_space<vmem>>, vector<1x128xf32>
      %17 = vector.broadcast %16 : vector<1x128xf32> to vector<16x128xf32>
      %18 = arith.addf %15, %17 : vector<16x128xf32>
      %cst_17 = arith.constant 0.000000e+00 : f32
      %19 = vector.broadcast %cst_17 : f32 to vector<16x128xf32>
      %20 = arith.maximumf %18, %19 : vector<16x128xf32>
      %21 = arith.truncf %20 : vector<16x128xf32> to vector<16x128xbf16>
      %c0_18 = arith.constant 0 : index
      %c0_19 = arith.constant 0 : index
      %22 = vector.load %arg6[%c0_18, %c0_19] : memref<16x128xbf16, #tpu.memory_space<vmem>>, vector<16x128xbf16>
      tpu.vector_store %arg6[%c0_18, %c0_19], %21 {strides = array<i32>} : memref<16x128xbf16, #tpu.memory_space<vmem>>, vector<16x128xbf16>,
    } else {
    }
    return
  }
  func.func @transform_0(%arg0: i32, %arg1: i32) -> (i32, i32) {
    %c0_i32 = arith.constant 0 : i32
    return %arg0, %arg1 : i32, i32
  }
  func.func @transform_1(%arg0: i32, %arg1: i32) -> (i32, i32) {
    %c0_i32 = arith.constant 0 : i32
    %c0_i32_0 = arith.constant 0 : i32
    return %arg1, %c0_i32 : i32, i32
  }
  func.func @transform_2(%arg0: i32, %arg1: i32) -> (i32, i32) {
    %c0_i32 = arith.constant 0 : i32
    %c0_i32_0 = arith.constant 0 : i32
    %c0_i32_1 = arith.constant 0 : i32
    return %c0_i32, %c0_i32_0 : i32, i32
  }
  func.func @transform_3(%arg0: i32, %arg1: i32) -> (i32, i32) {
    %c0_i32 = arith.constant 0 : i32
    %c0_i32_0 = arith.constant 0 : i32
    %c0_i32_1 = arith.constant 0 : i32
    return %c0_i32, %c0_i32_0 : i32, i32
  }
  func.func @transform_4(%arg0: i32, %arg1: i32) -> (i32, i32) {
    %c0_i32 = arith.constant 0 : i32
    %c0_i32_0 = arith.constant 0 : i32
    return %arg0, %c0_i32 : i32, i32
  }
}

</mosaic_0001>

<llo_original>
// kernel: tpu_custom_call.1
$region0: #{tpu_custom_call.1}
  #allocation0 [shape = 'u32[]', space=smem, size = 0x4, offset = 0x4, fixed_abs, tag = 'smem constant byte address 0x4 - core index']
  #allocation1 [shape = 'u32[72,128]{1,0:T(1,128)}', space=vmem, size = 0x9000, scoped, tag = 'internal scratch']
  #allocation2 [shape = 'f32[16,128]{1,0:T(8,128)}', space=vmem, size = 0x2000, scoped, tag = 'scratch operand']
  %s0 = inlined_call_operand.hbm [shape: bf16[16,16], index: 0, kind: input, shape index: {}]
  %s1 = inlined_call_operand.hbm [shape: bf16[16,32], index: 1, kind: input, shape index: {}]
  %s2 = inlined_call_operand.hbm [shape: bf16[32,128], index: 2, kind: input, shape index: {}]
  %s3 = inlined_call_operand.vmem [shape: f32[1,128], index: 3, kind: input, shape index: {}]
  %s4 = inlined_call_operand.hbm [shape: bf16[16,128], index: 4, kind: output, shape index: {}]
  %s5 = sld [smem:[#allocation0]]
  $region46: #{tpu_custom_call.1} parent=0
    _
  %s7 = ssub.s32 1, %s5
  %s8 = scalar_select 0, %s7, %s5
  $region1: #{tpu_custom_call.1} parent=0
    #allocation3 [shape = 'u8[4096]{0}', space=vmem, size = 0x1000, scoped, tag = 'input window, operand 0, single buffered']
    #allocation4 [shape = 's32[1]{0}', space=sflag, size = 0x4, scoped, tag = 'scoped memory for tpu_custom_call.1']
    #allocation5 [shape = 's32[1]{0}', space=sflag, size = 0x4, scoped, tag = 'scoped memory for tpu_custom_call.1']
    #allocation6 [shape = 'u8[4096]{0}', space=vmem, size = 0x1000, scoped, tag = 'input window, operand 1, single buffered']
    #allocation7 [shape = 's32[1]{0}', space=sflag, size = 0x4, scoped, tag = 'scoped memory for tpu_custom_call.1']
    #allocation8 [shape = 'u8[8192]{0}', space=vmem, size = 0x2000, scoped, tag = 'input window, operand 2, single buffered']
    #allocation9 [shape = 'u8[4096]{0}', space=vmem, size = 0x1000, scoped, tag = 'output window, operand 0, single buffered']
    %9 = vsyncpa [#allocation4], 0
    %10 = vsyncpa [#allocation7], 0
    %11 = vsyncpa [#allocation5], 0
    // Predicated region
    $region2: #{tpu_custom_call.1} parent=1 // pred_check
      _
    $region3: #{tpu_custom_call.1} parent=1 // pred_check_branch
      %13 = sbr.rel (0) target = $region5
    $region4: #{tpu_custom_call.1} parent=1 // pred_region
      %15 = vsyncadd [#allocation4], 0
      %s16 = sshll.u32 %s0, 4
      %s17 = int_to_ptr.hbm [resolvable:$true] %s16
      %s18 = sshll.u32 [#allocation3], 4
      %s19 = int_to_ptr.vmem [resolvable:$true] %s18
      %24 = dma.hbm_to_vmem [thread:$0]  %s17, 128, %s19, [#allocation4], 64, 64, 4
    $region5: #{tpu_custom_call.1} parent=1 // pred_fallthru
      _
    // Predicated region
    $region6: #{tpu_custom_call.1} parent=1 // pred_check
      _
    $region7: #{tpu_custom_call.1} parent=1 // pred_check_branch
      %26 = sbr.rel (0) target = $region9
    $region8: #{tpu_custom_call.1} parent=1 // pred_region
      %28 = vsyncadd [#allocation7], 0
      %s29 = sshll.u32 %s1, 4
      %s30 = int_to_ptr.hbm [resolvable:$true] %s29
      %s31 = sshll.u32 [#allocation6], 4
      %s32 = int_to_ptr.vmem [resolvable:$true] %s31
      %37 = dma.hbm_to_vmem [thread:$0]  %s30, 128, %s32, [#allocation7], 64, 64, 4
    $region9: #{tpu_custom_call.1} parent=1 // pred_fallthru
      _
    // Predicated region
    $region10: #{tpu_custom_call.1} parent=1 // pred_check
      _
    $region11: #{tpu_custom_call.1} parent=1 // pred_check_branch
      %39 = sbr.rel (0) target = $region13
    $region12: #{tpu_custom_call.1} parent=1 // pred_region
      %41 = vsyncadd [#allocation7], 0
      %s42 = sshll.u32 %s2, 4
      %s43 = int_to_ptr.hbm [resolvable:$true] %s42
      %s44 = sshll.u32 [#allocation8], 4
      %s45 = int_to_ptr.vmem [resolvable:$true] %s44
      %50 = dma.hbm_to_vmem [thread:$0]  %s43, 256, %s45, [#allocation7], 64, 64, 4
    $region13: #{tpu_custom_call.1} parent=1 // pred_fallthru
      _
    // Predicated region
    $region14: #{tpu_custom_call.1} parent=1 // pred_check
      _
    $region15: #{tpu_custom_call.1} parent=1 // pred_check_branch
      %52 = sbr.rel (0) target = $region17
    $region16: #{tpu_custom_call.1} parent=1 // pred_region
      _
    $region17: #{tpu_custom_call.1} parent=1 // pred_fallthru
      _
    // Predicated region
    $region18: #{tpu_custom_call.1} parent=1 // pred_check
      _
    $region19: #{tpu_custom_call.1} parent=1 // pred_check_branch
      %54 = sbr.rel (0) target = $region21
    $region20: #{tpu_custom_call.1} parent=1 // pred_region
      %56 = dma.done [#allocation4], 128
    $region21: #{tpu_custom_call.1} parent=1 // pred_fallthru
      _
    // Predicated region
    $region22: #{tpu_custom_call.1} parent=1 // pred_check
      _
    $region23: #{tpu_custom_call.1} parent=1 // pred_check_branch
      %58 = sbr.rel (0) target = $region25
    $region24: #{tpu_custom_call.1} parent=1 // pred_region
      %60 = dma.done [#allocation7], 128
    $region25: #{tpu_custom_call.1} parent=1 // pred_fallthru
      _
    // Predicated region
    $region26: #{tpu_custom_call.1} parent=1 // pred_check
      _
    $region27: #{tpu_custom_call.1} parent=1 // pred_check_branch
      %62 = sbr.rel (0) target = $region29
    $region28: #{tpu_custom_call.1} parent=1 // pred_region
      %64 = dma.done [#allocation7], 256
    $region29: #{tpu_custom_call.1} parent=1 // pred_fallthru
      _
    %p66 = scmp.eq.s32.totalorder 0, 0
    // Predicated region
    $region30: #{tpu_custom_call.1} parent=1 // pred_check
      %p67 = pneg %p66
    $region31: #{tpu_custom_call.1} parent=1 // pred_check_branch
      %69 = sbr.rel (%p67) target = $region33
    $region32: #{tpu_custom_call.1} parent=1 // pred_region
      %70 = vst [vmem:[#allocation2] sm:$0xff] 0.0
      %71 = vst [vmem:[#allocation2 + $0x8] sm:$0xff] 0.0
    $region33: #{tpu_custom_call.1} parent=1 // pred_fallthru
      _
    %v72 = vld [vmem:[#allocation6] sm:$0xf]
    %v73 = vld [vmem:[#allocation6 + $0x4] sm:$0xf]
    %v74 = vld [vmem:[#allocation8] sm:$0xf]
    %v75 = vld [vmem:[#allocation8 + $0x4] sm:$0xf]
    %v76 = vld [vmem:[#allocation8 + $0x8] sm:$0xf]
    %v77 = vld [vmem:[#allocation8 + $0xc] sm:$0xf]
    %v80 = vunpack.c.l.b16 %v72
    %v81 = vunpack.c.l.b16 %v73
    %v82 = vpack.c.b16 %v81, %v80
    %v87 = vunpack.c.l.b16 %v74
    %v88 = vunpack.c.l.b16 %v75
    %v89 = vunpack.c.l.b16 %v76
    %v90 = vunpack.c.l.b16 %v77
    %v91 = vpack.c.b16 %v88, %v87
    %v92 = vpack.c.b16 %v90, %v89
    %vm95 = vcmask 261120
    %v97 = vsel %vm95, %v82, 0
    %99 = vmatpush.bf16.msra.mxu0 0
    %100 = vmatpush.bf16.msra.mxu0 0
    %101 = vmatpush.bf16.msra.mxu0 0
    %102 = vmatpush.bf16.msra.mxu0 0
    %103 = vmatpush.bf16.msra.mxu0 0
    %104 = vmatpush.bf16.msra.mxu0 0
    %105 = vmatpush.bf16.msra.mxu0 %v92
    %106 = vmatpush.bf16.msra.mxu0 %v91
    %107 = vmatmul.bf16.gmra.mxu0 %v97
    %v108 = vpop.f32.mrf.mxu0
    %v109 = vadd.f32 0.0, %v108
    %v110 = vpop.f32.mrf.mxu0
    %v111 = vadd.f32 0.0, %v110
    %112 = vdwg.mxu0
    %v113 = vld [vmem:[#allocation2] sm:$0xff]
    %v114 = vld [vmem:[#allocation2 + $0x8] sm:$0xff]
    %v115 = vld [vmem:[#allocation3] sm:$0xf]
    %v116 = vld [vmem:[#allocation3 + $0x4] sm:$0xf]
    %v117 = vpack.c.bf16 %v111, %v109
    %v120 = vunpack.c.l.b16 %v115
    %v121 = vunpack.c.l.b16 %v116
    %v122 = vpack.c.b16 %v121, %v120
    %vm123 = vcmask 130048
    %v125 = vsel %vm123, %v122, 0
    %127 = vmatpush.bf16.msra.mxu0 0
    %128 = vmatpush.bf16.msra.mxu0 0
    %129 = vmatpush.bf16.msra.mxu0 0
    %130 = vmatpush.bf16.msra.mxu0 0
    %131 = vmatpush.bf16.msra.mxu0 0
    %132 = vmatpush.bf16.msra.mxu0 0
    %133 = vmatpush.bf16.msra.mxu0 0
    %134 = vmatpush.bf16.msra.mxu0 %v117
    %135 = vmatmul.bf16.gmra.mxu0 %v125
    %v136 = vpop.f32.mrf.mxu0
    %v137 = vadd.f32 0.0, %v136
    %v138 = vpop.f32.mrf.mxu0
    %v139 = vadd.f32 0.0, %v138
    %140 = vdwg.mxu0
    %v141 = vadd.f32 %v113, %v137
    %v142 = vadd.f32 %v114, %v139
    %143 = vst [vmem:[#allocation2] sm:$0xff] %v141
    %144 = vst [vmem:[#allocation2 + $0x8] sm:$0xff] %v142
    // Predicated region
    $region34: #{tpu_custom_call.1} parent=1 // pred_check
      %p145 = pneg %p66
    $region35: #{tpu_custom_call.1} parent=1 // pred_check_branch
      %147 = sbr.rel (%p145) target = $region37
    $region36: #{tpu_custom_call.1} parent=1 // pred_region
      %v148 = vld [vmem:[#allocation2] sm:$0xff]
      %v149 = vld [vmem:[#allocation2 + $0x8] sm:$0xff]
      %v150 = vld [vmem:[%s3] sm:$0x1]
      %v152 = vperm.slane %v150, 0
      %v154 = vadd.f32 %v148, %v152
      %v155 = vadd.f32 %v149, %v152
      %v156 = vmax.f32 %v154, 0.0
      %v157 = vmax.f32 %v155, 0.0
      %v158 = vpack.c.bf16 %v156, %v156
      %v159 = vpack.c.bf16 %v157, %v157
      %160 = vst [vmem:[#allocation9] sm:$0xf] %v158
      %161 = vst [vmem:[#allocation9 + $0x4] sm:$0xf] %v159
    $region37: #{tpu_custom_call.1} parent=1 // pred_fallthru
      _
    // Predicated region
    $region38: #{tpu_custom_call.1} parent=1 // pred_check
      _
    $region39: #{tpu_custom_call.1} parent=1 // pred_check_branch
      %163 = sbr.rel (0) target = $region41
    $region40: #{tpu_custom_call.1} parent=1 // pred_region
      %165 = vsyncadd [#allocation5], 0
      %s166 = sshll.u32 [#allocation9], 4
      %s167 = int_to_ptr.vmem [resolvable:$true] %s166
      %s168 = sshll.u32 %s4, 4
      %s169 = int_to_ptr.hbm [resolvable:$true] %s168
      %174 = dma.vmem_to_hbm [thread:$0]  %s167, 128, %s169, [#allocation5], 64, 64, 4
    $region41: #{tpu_custom_call.1} parent=1 // pred_fallthru
      _
    // Predicated region
    $region42: #{tpu_custom_call.1} parent=1 // pred_check
      _
    $region43: #{tpu_custom_call.1} parent=1 // pred_check_branch
      %176 = sbr.rel (0) target = $region45
    $region44: #{tpu_custom_call.1} parent=1 // pred_region
      %178 = dma.done [#allocation5], 128
    $region45: #{tpu_custom_call.1} parent=1 // pred_fallthru
      _
    %179 = vsyncpa [#allocation4], 1
    %180 = vsyncpa [#allocation7], 1
    %181 = vsyncpa [#allocation5], 1

</llo_original>
